<compile_context>
chip_gen: v7x
topology: tpu7x:2x2x1
jax: 0.10.0
libtpu: 0.0.40
codegen_flags: <defaults>
</compile_context>

<pallas_src>
import functools
import math

import jax
import jax.numpy as jnp
from jax import lax
from jax.experimental import pallas as pl
from jax.experimental.pallas import tpu as pltpu

_LOG_CLIP = math.log(1e-10)   # torch clips probs at 1e-10 before log


def _focal_entropy_kernel(x_ref, t_ref, out_ref, *, t_hw, hw_total):
    """One grid step: a (1, C, t_hw) block (classes on sublanes, spatial on lanes).

    Writes a (1, 1, 8, 128) partial-sum tile:
      sublanes 0-3 : sum over valid lanes of -(1-pt)^2 * log(pt)
      sublanes 4-7 : sum over valid lanes of -(pt * log(pt))
    """
    h = pl.program_id(1)

    x = x_ref[...].astype(jnp.float32)     # (1, C, t_hw)
    t = t_ref[...]                         # (1, 1, t_hw) int32

    # log-softmax over the class (sublane) axis
    mmax = jnp.max(x, axis=1, keepdims=True)                       # (1, 1, t_hw)
    s = x - mmax                                                   # (1, C, t_hw)
    logz = jnp.log(jnp.sum(jnp.exp(s), axis=1, keepdims=True))     # (1, 1, t_hw)

    # gather the target-class logit via one-hot compare against a sublane iota
    cls = lax.broadcasted_iota(jnp.int32, x.shape, 1)
    s_t = jnp.sum(jnp.where(cls == t, s, 0.0), axis=1, keepdims=True)  # (1,1,t_hw)

    # clamp-before-log done in the log domain (log is monotone)
    logpt = jnp.maximum(s_t - logz, jnp.float32(_LOG_CLIP))
    pt = jnp.exp(logpt)

    one_m = 1.0 - pt
    focal = -(one_m * one_m) * logpt       # gamma == 2.0 statically -> square
    ent = -(pt * logpt)

    # mask lanes past the end of H*W (last block may be partial); jnp.where so
    # garbage / NaN in the out-of-bounds region cannot poison the sums.
    col = h * t_hw + lax.broadcasted_iota(jnp.int32, (1, 1, t_hw), 2)
    valid = col < hw_total
    fsum = jnp.sum(jnp.where(valid, focal, 0.0))
    esum = jnp.sum(jnp.where(valid, ent, 0.0))

    row = lax.broadcasted_iota(jnp.int32, (1, 1, 8, 128), 2)
    out_ref[...] = jnp.where(row < 4, fsum, esum)


def focal_loss_entropy(logits_nchw, targets_nhw, *, entropy_coefficient=0.1,
                       t_hw=None):
    """FocalLoss_Entropy forward. Returns a scalar f32 loss."""
    N, C, H, W = logits_nchw.shape
    HW = H * W
    M = N * HW

    # Lane-dense views; pure reshapes, no transpose / pad / copy. bf16 logits
    # are accepted as-is (kernel upcasts to f32 before exp/log).
    x = logits_nchw.reshape(N, C, HW)
    t = targets_nhw.reshape(N, 1, HW).astype(jnp.int32)

    if t_hw is None:
        # Large lane tiles (multiple of 128) amortize the ~0.35us/step overhead;
        # cap the logits block at ~4 MiB so double-buffered inputs stay far
        # below even v5e's 16 MiB scoped default and v7x's 64 MiB physical VMEM.
        itemsize = jnp.dtype(x.dtype).itemsize
        cap = max(128, ((4 * 1024 * 1024) // (C * itemsize)) // 128 * 128)
        t_hw = min(16384, cap)
    if HW <= t_hw:
        t_hw = HW                           # single full-extent block per image
    else:
        t_hw = max(128, (t_hw // 128) * 128)
    n_hw = pl.cdiv(HW, t_hw)

    kernel = functools.partial(_focal_entropy_kernel, t_hw=t_hw, hw_total=HW)

    partials = pl.pallas_call(
        kernel,
        out_shape=jax.ShapeDtypeStruct((N, n_hw, 8, 128), jnp.float32),
        grid_spec=pltpu.PrefetchScalarGridSpec(
            num_scalar_prefetch=0,
            grid=(N, n_hw),
            in_specs=[
                pl.BlockSpec((1, C, t_hw), lambda n, h: (n, 0, h)),
                pl.BlockSpec((1, 1, t_hw), lambda n, h: (n, 0, h)),
            ],
            out_specs=pl.BlockSpec((1, 1, 8, 128), lambda n, h: (n, h, 0, 0)),
        ),
        compiler_params=pltpu.CompilerParams(
            dimension_semantics=("parallel", "parallel"),
            vmem_limit_bytes=32 * 1024 * 1024,
        ),
    )(x, t)

    # focal loss: mean over all N*H*W gathered probabilities
    focal = jnp.sum(partials[:, :, 0, 0]) / jnp.float32(M)
    # entropy: torch does -sum(pt*log(pt), dim=1).mean() with pt of shape
    # [N, H, W] -> sum over H, mean over [N, W]  ==  total / (N*W)
    entropy = jnp.sum(partials[:, :, 4, 0]) / jnp.float32(N * W)
    return focal + jnp.float32(entropy_coefficient) * entropy


def _reference(logits, targets, entropy_coefficient=0.1, gamma=2.0):
    """Pure-JAX reference mirroring the PyTorch module exactly."""
    p = jax.nn.softmax(logits, axis=1)
    p = jnp.maximum(p, 1e-10)
    pt = jnp.take_along_axis(p, targets[:, None, :, :], axis=1)[:, 0]   # [N,H,W]
    logpt = jnp.log(pt)
    focal = jnp.mean(-((1.0 - pt) ** gamma) * logpt)
    entropy = jnp.mean(-jnp.sum(pt * logpt, axis=1))                    # sum over H
    return focal + entropy_coefficient * entropy


if __name__ == "__main__":
    key = jax.random.PRNGKey(0)
    k1, k2 = jax.random.split(key)

    # Main shape consistent with the module: N=2, C=4, H=W=16.
    N, C, H, W = 2, 4, 16, 16
    logits = jax.random.normal(k1, (N, C, H, W), dtype=jnp.float32)
    targets = jax.random.randint(k2, (N, H, W), 0, C, dtype=jnp.int32)

    out = jax.block_until_ready(focal_loss_entropy(logits, targets))
    ref = _reference(logits, targets)
    assert jnp.allclose(out, ref, rtol=1e-5, atol=1e-5), (float(out), float(ref))

    # Also exercise the masked partial-last-block path (HW=400 not a multiple
    # of the forced 128-lane tile).
    N2, C2, H2, W2 = 2, 4, 20, 20
    logits2 = jax.random.normal(k1, (N2, C2, H2, W2), dtype=jnp.float32)
    targets2 = jax.random.randint(k2, (N2, H2, W2), 0, C2, dtype=jnp.int32)
    out2 = jax.block_until_ready(focal_loss_entropy(logits2, targets2, t_hw=128))
    ref2 = _reference(logits2, targets2)
    assert jnp.allclose(out2, ref2, rtol=1e-5, atol=1e-5), (float(out2), float(ref2))

    print("KERNEL_OK")
</pallas_src>

<mosaic_0001>
module attributes {stable_mosaic.version = 11 : i64} {
  func.func @_focal_entropy_kernel(%arg0: i32, %arg1: i32, %arg2: memref<1x4x256xf32, #tpu.memory_space<vmem>>, %arg3: memref<1x1x256xi32, #tpu.memory_space<vmem>>, %arg4: memref<1x1x8x128xf32, #tpu.memory_space<vmem>>) attributes {dimension_semantics = [#tpu.dimension_semantics<parallel>, #tpu.dimension_semantics<parallel>], iteration_bounds = array<i64: 2, 1>, scalar_prefetch = 0 : i64, scratch_operands = 0 : i64, tpu.core_type = #tpu.core_type<tc>, window_params = [{transform_indices = @transform_0, window_bounds = array<i64: 1, 4, 256>}, {transform_indices = @transform_1, window_bounds = array<i64: 1, 1, 256>}, {transform_indices = @transform_2, window_bounds = array<i64: 1, 1, 8, 128>}]} {
    %c0 = arith.constant 0 : index
    %c0_0 = arith.constant 0 : index
    %c0_1 = arith.constant 0 : index
    %0 = vector.load %arg2[%c0, %c0_0, %c0_1] : memref<1x4x256xf32, #tpu.memory_space<vmem>>, vector<1x4x256xf32>
    %c0_2 = arith.constant 0 : index
    %c0_3 = arith.constant 0 : index
    %c0_4 = arith.constant 0 : index
    %1 = vector.load %arg3[%c0_2, %c0_3, %c0_4] : memref<1x1x256xi32, #tpu.memory_space<vmem>>, vector<1x1x256xi32>
    %cst = arith.constant dense<0xFF800000> : vector<1x256xf32>
    %2 = vector.multi_reduction <maximumf>, %0, %cst [1] : vector<1x4x256xf32> to vector<1x256xf32>
    %3 = vector.shape_cast %2 : vector<1x256xf32> to vector<1x1x256xf32>
    %4 = vector.broadcast %3 : vector<1x1x256xf32> to vector<1x4x256xf32>
    %5 = arith.subf %0, %4 : vector<1x4x256xf32>
    %6 = math.exp %5 : vector<1x4x256xf32>
    %cst_5 = arith.constant dense<0.000000e+00> : vector<1x256xf32>
    %7 = vector.multi_reduction <add>, %6, %cst_5 [1] : vector<1x4x256xf32> to vector<1x256xf32>
    %8 = vector.shape_cast %7 : vector<1x256xf32> to vector<1x1x256xf32>
    %9 = math.log %8 : vector<1x1x256xf32>
    %10 = tpu.iota {dimensions = array<i32: 1>} : vector<1x4x256xi32>
    %11 = vector.broadcast %1 : vector<1x1x256xi32> to vector<1x4x256xi32>
    %12 = arith.cmpi eq, %10, %11 : vector<1x4x256xi32>
    %cst_6 = arith.constant 0.000000e+00 : f32
    %13 = vector.broadcast %cst_6 : f32 to vector<1x4x256xf32>
    %14 = arith.select %12, %5, %13 : vector<1x4x256xi1>, vector<1x4x256xf32>
    %cst_7 = arith.constant dense<0.000000e+00> : vector<1x256xf32>
    %15 = vector.multi_reduction <add>, %14, %cst_7 [1] : vector<1x4x256xf32> to vector<1x256xf32>
    %16 = vector.shape_cast %15 : vector<1x256xf32> to vector<1x1x256xf32>
    %17 = arith.subf %16, %9 : vector<1x1x256xf32>
    %cst_8 = arith.constant -23.0258503 : f32
    %18 = vector.broadcast %cst_8 : f32 to vector<1x1x256xf32>
    %19 = arith.maximumf %17, %18 : vector<1x1x256xf32>
    %20 = math.exp %19 : vector<1x1x256xf32>
    %cst_9 = arith.constant 1.000000e+00 : f32
    %21 = vector.broadcast %cst_9 : f32 to vector<1x1x256xf32>
    %22 = arith.subf %21, %20 : vector<1x1x256xf32>
    %23 = arith.mulf %22, %22 : vector<1x1x256xf32>
    %cst_10 = arith.constant 0.000000e+00 : f32
    %24 = vector.broadcast %cst_10 : f32 to vector<1x1x256xf32>
    %25 = arith.subf %24, %23 : vector<1x1x256xf32>
    %26 = arith.mulf %25, %19 : vector<1x1x256xf32>
    %27 = arith.mulf %20, %19 : vector<1x1x256xf32>
    %cst_11 = arith.constant 0.000000e+00 : f32
    %28 = vector.broadcast %cst_11 : f32 to vector<1x1x256xf32>
    %29 = arith.subf %28, %27 : vector<1x1x256xf32>
    %c256_i32 = arith.constant 256 : i32
    %30 = arith.muli %arg1, %c256_i32 : i32
    %31 = tpu.iota {dimensions = array<i32: 2>} : vector<1x1x256xi32>
    %32 = vector.broadcast %30 : i32 to vector<1x1x256xi32>
    %33 = arith.addi %32, %31 : vector<1x1x256xi32>
    %c256_i32_12 = arith.constant 256 : i32
    %34 = vector.broadcast %c256_i32_12 : i32 to vector<1x1x256xi32>
    %35 = arith.cmpi slt, %33, %34 : vector<1x1x256xi32>
    %cst_13 = arith.constant 0.000000e+00 : f32
    %36 = vector.broadcast %cst_13 : f32 to vector<1x1x256xf32>
    %37 = arith.select %35, %26, %36 : vector<1x1x256xi1>, vector<1x1x256xf32>
    %38 = vector.shape_cast %37 : vector<1x1x256xf32> to vector<1x1x1x256xf32>
    %cst_14 = arith.constant dense<0.000000e+00> : vector<1xf32>
    %39 = vector.multi_reduction <add>, %38, %cst_14 [1, 2, 3] : vector<1x1x1x256xf32> to vector<1xf32>
    %40 = vector.shape_cast %39 : vector<1xf32> to vector<1x1x1x1xf32>
    %41 = vector.extract %40[0, 0, 0, 0] : f32 from vector<1x1x1x1xf32>
    %cst_15 = arith.constant 0.000000e+00 : f32
    %42 = vector.broadcast %cst_15 : f32 to vector<1x1x256xf32>
    %43 = arith.select %35, %29, %42 : vector<1x1x256xi1>, vector<1x1x256xf32>
    %44 = vector.shape_cast %43 : vector<1x1x256xf32> to vector<1x1x1x256xf32>
    %cst_16 = arith.constant dense<0.000000e+00> : vector<1xf32>
    %45 = vector.multi_reduction <add>, %44, %cst_16 [1, 2, 3] : vector<1x1x1x256xf32> to vector<1xf32>
    %46 = vector.shape_cast %45 : vector<1xf32> to vector<1x1x1x1xf32>
    %47 = vector.extract %46[0, 0, 0, 0] : f32 from vector<1x1x1x1xf32>
    %48 = tpu.iota {dimensions = array<i32: 2>} : vector<1x1x8x128xi32>
    %c4_i32 = arith.constant 4 : i32
    %49 = vector.broadcast %c4_i32 : i32 to vector<1x1x8x128xi32>
    %50 = arith.cmpi slt, %48, %49 : vector<1x1x8x128xi32>
    %51 = vector.broadcast %41 : f32 to vector<1x1x8x128xf32>
    %52 = vector.broadcast %47 : f32 to vector<1x1x8x128xf32>
    %53 = arith.select %50, %51, %52 : vector<1x1x8x128xi1>, vector<1x1x8x128xf32>
    %c0_17 = arith.constant 0 : index
    %c0_18 = arith.constant 0 : index
    %c0_19 = arith.constant 0 : index
    %c0_20 = arith.constant 0 : index
    %54 = vector.load %arg4[%c0_17, %c0_18, %c0_19, %c0_20] : memref<1x1x8x128xf32, #tpu.memory_space<vmem>>, vector<1x1x8x128xf32>
    tpu.vector_store %arg4[%c0_17, %c0_18, %c0_19, %c0_20], %53 {strides = array<i32>} : memref<1x1x8x128xf32, #tpu.memory_space<vmem>>, vector<1x1x8x128xf32>,
    return
  }
  func.func @transform_0(%arg0: i32, %arg1: i32) -> (i32, i32, i32) {
    %c0_i32 = arith.constant 0 : i32
    %c0_i32_0 = arith.constant 0 : i32
    return %arg0, %c0_i32, %arg1 : i32, i32, i32
  }
  func.func @transform_1(%arg0: i32, %arg1: i32) -> (i32, i32, i32) {
    %c0_i32 = arith.constant 0 : i32
    %c0_i32_0 = arith.constant 0 : i32
    return %arg0, %c0_i32, %arg1 : i32, i32, i32
  }
  func.func @transform_2(%arg0: i32, %arg1: i32) -> (i32, i32, i32, i32) {
    %c0_i32 = arith.constant 0 : i32
    %c0_i32_0 = arith.constant 0 : i32
    %c0_i32_1 = arith.constant 0 : i32
    return %arg0, %arg1, %c0_i32, %c0_i32_0 : i32, i32, i32, i32
  }
}

</mosaic_0001>

<llo_original>
// kernel: tpu_custom_call.1
$region0: #{tpu_custom_call.1}
  #allocation0 [shape = 'u32[]', space=smem, size = 0x4, offset = 0x4, fixed_abs, tag = 'smem constant byte address 0x4 - core index']
  #allocation1 [shape = 'u32[144,128]{1,0:T(1,128)}', space=vmem, size = 0x12000, scoped, tag = 'internal scratch']
  %s0 = inlined_call_operand.hbm [shape: f32[2,4,256], index: 0, kind: input, shape index: {}]
  %s1 = inlined_call_operand.hbm [shape: s32[2,1,256], index: 1, kind: input, shape index: {}]
  %s2 = inlined_call_operand.hbm [shape: f32[2,1,8,128], index: 2, kind: output, shape index: {}]
  %s3 = sld [smem:[#allocation0]]
  $region49: #{tpu_custom_call.1} parent=0
    _
  %s5 = ssub.s32 1, %s3
  %s6 = scalar_select 0, %s5, %s3
  $region1: #{tpu_custom_call.1} parent=0
    #allocation2 [shape = 'u8[8192]{0}', space=vmem, size = 0x2000, scoped, tag = 'input window, operand 0']
    #allocation3 [shape = 's32[2]{0}', space=sflag, size = 0x8, scoped, tag = 'scoped memory for tpu_custom_call.1']
    #allocation4 [shape = 's32[2]{0}', space=sflag, size = 0x8, scoped, tag = 'scoped memory for tpu_custom_call.1']
    #allocation5 [shape = 'u8[2048]{0}', space=vmem, size = 0x800, scoped, tag = 'input window, operand 1']
    #allocation6 [shape = 's32[2]{0}', space=sflag, size = 0x8, scoped, tag = 'scoped memory for tpu_custom_call.1']
    #allocation7 [shape = 'u8[8192]{0}', space=vmem, size = 0x2000, scoped, tag = 'output window, operand 0']
    %7 = vsyncpa [#allocation3], 0
    %s8 = scalar_lea.sflag [#allocation3], 1
    %9 = vsyncpa %s8, 0
    %10 = vsyncpa [#allocation6], 0
    %s11 = scalar_lea.sflag [#allocation6], 1
    %12 = vsyncpa %s11, 0
    %13 = vsyncpa [#allocation4], 0
    %s14 = scalar_lea.sflag [#allocation4], 1
    %15 = vsyncpa %s14, 0
    loop: start=0, step=1, limit=4
    $region2: #{tpu_custom_call.1} parent=1 // loop_pre_header
      _
    $region3: #{tpu_custom_call.1} parent=1 // loop_header
      %s17 = sphi 0, %s21
      %p18 = scmp.ge.s32.totalorder %s17, 4
      %s24 = sphi 0, %s36
      %s25 = sphi 0, %s32
      %s26 = sphi 0, %s24
      %s27 = sphi 0, %s25
      %s28 = sphi 0, %s26
      %s29 = sphi 0, %s27
      %s41 = sphi 0, %s43
      %s44 = sphi 0, %s41
      %s45 = sphi 0, %s44
      %s61 = sphi 0, %s45
      %s69 = sphi 0, %s71
      %s72 = sphi 0, %s69
      %s73 = sphi 0, %s72
      %s89 = sphi 0, %s73
      %s97 = sphi 0, %s99
      %s100 = sphi 0, %s97
      %s101 = sphi 0, %s100
      %s117 = sphi 0, %s101
    $region4: #{tpu_custom_call.1} parent=1 // loop_header_branch
      %20 = sbr.rel (%p18) target = $region8
    $region5: #{tpu_custom_call.1} parent=1 // loop_body
      %s22 = ssub.s32 %s17, 1
      %s23 = ssub.s32 %s17, 2
      %s30 = sadd.s32 1, %s25
      %p31 = scmp.ge.s32.totalorder %s30, 1
      %s32 = scalar_select %p31, 0, %s30
      %s33 = sadd.s32 1, %s24
      %s34 = scalar_select %p31, %s33, %s24
      %p35 = scmp.ge.s32.totalorder %s34, 2
      %s36 = scalar_select %p35, 0, %s34
      %s37 = ssub.s32 %s24, %s36
      %s38 = ssub.s32 %s25, %s32
      %s39 = sor.u32 %s37, %s38
      %p40 = scmp.eq.s32.totalorder %s39, 0
      %s42 = sadd.s32 %s41, 1
      %s43 = scalar_select %p40, %s41, %s42
      %p46 = pneg %p40
      %p47 = scmp.eq.s32.totalorder %s17, 1
      %p48 = por %p46, %p47
      %p49 = scmp.ne.s32.totalorder %s41, %s44
      %p50 = scmp.eq.s32.totalorder %s17, 0
      %p51 = por %p49, %p50
      %p52 = scmp.ne.s32.totalorder %s41, %s44
      %p53 = scmp.eq.s32.totalorder %s22, 1
      %p54 = por %p52, %p53
      %p55 = scmp.ne.s32.totalorder %s44, %s45
      %p56 = scmp.eq.s32.totalorder %s22, 0
      %p57 = por %p55, %p56
      %p58 = scmp.ne.s32.totalorder %s44, %s45
      %p59 = scmp.eq.s32.totalorder %s23, 1
      %p60 = por %p58, %p59
      %p62 = scmp.ne.s32.totalorder %s45, %s61
      %p63 = scmp.eq.s32.totalorder %s23, 0
      %p64 = por %p62, %p63
      %s65 = ssub.s32 %s24, %s36
      %s66 = ssub.s32 %s25, %s32
      %s67 = sor.u32 %s65, %s66
      %p68 = scmp.eq.s32.totalorder %s67, 0
      %s70 = sadd.s32 %s69, 1
      %s71 = scalar_select %p68, %s69, %s70
      %p74 = pneg %p68
      %p75 = scmp.eq.s32.totalorder %s17, 1
      %p76 = por %p74, %p75
      %p77 = scmp.ne.s32.totalorder %s69, %s72
      %p78 = scmp.eq.s32.totalorder %s17, 0
      %p79 = por %p77, %p78
      %p80 = scmp.ne.s32.totalorder %s69, %s72
      %p81 = scmp.eq.s32.totalorder %s22, 1
      %p82 = por %p80, %p81
      %p83 = scmp.ne.s32.totalorder %s72, %s73
      %p84 = scmp.eq.s32.totalorder %s22, 0
      %p85 = por %p83, %p84
      %p86 = scmp.ne.s32.totalorder %s72, %s73
      %p87 = scmp.eq.s32.totalorder %s23, 1
      %p88 = por %p86, %p87
      %p90 = scmp.ne.s32.totalorder %s73, %s89
      %p91 = scmp.eq.s32.totalorder %s23, 0
      %p92 = por %p90, %p91
      %s93 = ssub.s32 %s24, %s36
      %s94 = ssub.s32 %s25, %s32
      %s95 = sor.u32 %s93, %s94
      %p96 = scmp.eq.s32.totalorder %s95, 0
      %s98 = sadd.s32 %s97, 1
      %s99 = scalar_select %p96, %s97, %s98
      %p102 = pneg %p96
      %p103 = scmp.eq.s32.totalorder %s17, 1
      %p104 = por %p102, %p103
      %p105 = scmp.ne.s32.totalorder %s97, %s100
      %p106 = scmp.eq.s32.totalorder %s17, 0
      %p107 = por %p105, %p106
      %p108 = scmp.ne.s32.totalorder %s97, %s100
      %p109 = scmp.eq.s32.totalorder %s22, 1
      %p110 = por %p108, %p109
      %p111 = scmp.ne.s32.totalorder %s100, %s101
      %p112 = scmp.eq.s32.totalorder %s22, 0
      %p113 = por %p111, %p112
      %p114 = scmp.ne.s32.totalorder %s100, %s101
      %p115 = scmp.eq.s32.totalorder %s23, 1
      %p116 = por %p114, %p115
      %p118 = scmp.ne.s32.totalorder %s101, %s117
      %p119 = scmp.eq.s32.totalorder %s23, 0
      %p120 = por %p118, %p119
      %p121 = scmp.le.s32.totalorder 1, %s17
      %p122 = scmp.lt.s32.totalorder %s17, 3
      %p123 = pnand %p121, %p122
      %p124 = pneg %p123
      // Predicated region
      $region9: #{tpu_custom_call.1} parent=5 // pred_check
        _
      $region10: #{tpu_custom_call.1} parent=5 // pred_check_branch
        %126 = sbr.rel (%p123) target = $region12
      $region11: #{tpu_custom_call.1} parent=5 // pred_region
        %s127 = ssub.s32 %s17, 1
      $region12: #{tpu_custom_call.1} parent=5 // pred_fallthru
        _
      %p128 = scmp.lt.s32.totalorder %s17, 2
      // Predicated region
      $region13: #{tpu_custom_call.1} parent=5 // pred_check
        %p129 = pneg %p128
      $region14: #{tpu_custom_call.1} parent=5 // pred_check_branch
        %131 = sbr.rel (%p129) target = $region16
      $region15: #{tpu_custom_call.1} parent=5 // pred_region
        // Predicated region
        $region17: #{tpu_custom_call.1} parent=15 // pred_check
          %p132 = pneg %p51
        $region18: #{tpu_custom_call.1} parent=15 // pred_check_branch
          %134 = sbr.rel (%p132) target = $region20
        $region19: #{tpu_custom_call.1} parent=15 // pred_region
          %s135 = sand.u32 %s41, 1
          %s136 = scalar_lea.sflag [#allocation3], %s135
          %s137 = sand.u32 %s41, 1
          %s138 = smul.addr %s137, 8
          %s139 = scalar_lea.vmem [#allocation2], %s138
          %s140 = smul.u32 2, %s25
          %s142 = ssub.s32 128, 128
          %143 = vsyncadd %s136, %s142
          %s144 = smul.addr %s24, 2
          %s145 = sadd.s32 %s140, %s144
          %s146 = smul.addr %s145, 64
          %s147 = scalar_lea.hbm %s0, %s146
          %s149 = sshll.u32 %s139, 4
          %s150 = int_to_ptr.vmem [resolvable:$true] %s149
          %152 = dma.hbm_to_vmem [thread:$0]  %s147, 128, %s150, %s136
        $region20: #{tpu_custom_call.1} parent=15 // pred_fallthru
          _
        // Predicated region
        $region21: #{tpu_custom_call.1} parent=15 // pred_check
          %p153 = pneg %p79
        $region22: #{tpu_custom_call.1} parent=15 // pred_check_branch
          %155 = sbr.rel (%p153) target = $region24
        $region23: #{tpu_custom_call.1} parent=15 // pred_region
          %s156 = sand.u32 %s69, 1
          %s157 = scalar_lea.sflag [#allocation6], %s156
          %s158 = sand.u32 %s69, 1
          %s159 = smul.addr %s158, 2
          %s160 = scalar_lea.vmem [#allocation5], %s159
          %s161 = smul.u32 2, %s25
          %s163 = ssub.s32 32, 32
          %164 = vsyncadd %s157, %s163
          %s165 = smul.addr %s24, 2
          %s166 = sadd.s32 %s161, %s165
          %s167 = smul.addr %s166, 16
          %s168 = scalar_lea.hbm %s1, %s167
          %s170 = sshll.u32 %s160, 4
          %s171 = int_to_ptr.vmem [resolvable:$true] %s170
          %173 = dma.hbm_to_vmem [thread:$0]  %s168, 32, %s171, %s157
        $region24: #{tpu_custom_call.1} parent=15 // pred_fallthru
          _
      $region16: #{tpu_custom_call.1} parent=5 // pred_fallthru
        _
      %p174 = scmp.le.s32.totalorder 1, %s17
      %p175 = scmp.lt.s32.totalorder %s17, 3
      %p176 = pnand %p174, %p175
      %p177 = pneg %p176
      // Predicated region
      $region25: #{tpu_custom_call.1} parent=5 // pred_check
        _
      $region26: #{tpu_custom_call.1} parent=5 // pred_check_branch
        %179 = sbr.rel (%p176) target = $region28
      $region27: #{tpu_custom_call.1} parent=5 // pred_region
        %s180 = ssub.s32 %s17, 1
        %s181 = sand.u32 %s44, 1
        %s182 = scalar_lea.sflag [#allocation3], %s181
        %s183 = sand.u32 %s44, 1
        %s184 = smul.addr %s183, 8
        %s185 = scalar_lea.vmem [#allocation2], %s184
        // Predicated region
        $region29: #{tpu_custom_call.1} parent=27 // pred_check
          %p186 = pneg %p57
        $region30: #{tpu_custom_call.1} parent=27 // pred_check_branch
          %188 = sbr.rel (%p186) target = $region32
        $region31: #{tpu_custom_call.1} parent=27 // pred_region
          %189 = dma.done %s182, 128
        $region32: #{tpu_custom_call.1} parent=27 // pred_fallthru
          _
        %s190 = sand.u32 %s72, 1
        %s191 = scalar_lea.sflag [#allocation6], %s190
        %s192 = sand.u32 %s72, 1
        %s193 = smul.addr %s192, 2
        %s194 = scalar_lea.vmem [#allocation5], %s193
        // Predicated region
        $region33: #{tpu_custom_call.1} parent=27 // pred_check
          %p195 = pneg %p85
        $region34: #{tpu_custom_call.1} parent=27 // pred_check_branch
          %197 = sbr.rel (%p195) target = $region36
        $region35: #{tpu_custom_call.1} parent=27 // pred_region
          %198 = dma.done %s191, 32
        $region36: #{tpu_custom_call.1} parent=27 // pred_fallthru
          _
        %s199 = sand.u32 %s44, 1
        %s200 = scalar_lea.sflag [#allocation3], %s199
        %s201 = sand.u32 %s44, 1
        %s202 = smul.addr %s201, 8
        %s203 = scalar_lea.vmem [#allocation2], %s202
        %p204 = pneg %p57
        %p205 = pneg %p54
        %s206 = sand.u32 %s72, 1
        %s207 = scalar_lea.sflag [#allocation6], %s206
        %s208 = sand.u32 %s72, 1
        %s209 = smul.addr %s208, 2
        %s210 = scalar_lea.vmem [#allocation5], %s209
        %p211 = pneg %p85
        %p212 = pneg %p82
        %p213 = pneg %p113
        %p214 = pneg %p110
        %s215 = sand.u32 %s100, 1
        %s216 = scalar_lea.sflag [#allocation4], %s215
        %s217 = sand.u32 %s100, 1
        %s218 = smul.addr %s217, 8
        %s219 = scalar_lea.vmem [#allocation7], %s218
        %s220 = smul.u32 2, %s27
        %s221 = smul.u32 2, %s27
        %v222 = vld [vmem:[%s185] sm:$0xff]
        %v223 = vld [vmem:[%s194] sm:$0x3]
        %v225 = vcombine.high %v222, %v222
        %vm227 = vcmask 1043456
        %v228 = vsel %vm227, %v222, -inf
        %v229 = vrot.slane %v228, 4
        %v230 = vmax.f32 %v228, %v229
        %v231 = vrot.slane %v230, 2
        %v232 = vmax.f32 %v230, %v231
        %v233 = vrot.slane %v232, 1
        %v234 = vmax.f32 %v232, %v233
        %v235 = vsel %vm227, %v225, -inf
        %v236 = vrot.slane %v235, 4
        %v237 = vmax.f32 %v235, %v236
        %v238 = vrot.slane %v237, 2
        %v239 = vmax.f32 %v237, %v238
        %v240 = vrot.slane %v239, 1
        %v241 = vmax.f32 %v239, %v240
        %v244 = vcombine.low %v234, %v241
        %v246 = vsub.f32 %v222, %v244
        %v247 = vmul.f32 %v246, 1.442695
        %v248 = vpow.pop %v247
        %v250 = vcombine.high %v248, %v248
        %v252 = vsel %vm227, %v248, 0.0
        %v253 = vrot.slane %v252, 4
        %v254 = vadd.f32 %v252, %v253
        %v255 = vrot.slane %v254, 2
        %v256 = vadd.f32 %v254, %v255
        %v257 = vrot.slane %v256, 1
        %v258 = vadd.f32 %v256, %v257
        %v259 = vsel %vm227, %v250, 0.0
        %v260 = vrot.slane %v259, 4
        %v261 = vadd.f32 %v259, %v260
        %v262 = vrot.slane %v261, 2
        %v263 = vadd.f32 %v261, %v262
        %v264 = vrot.slane %v263, 1
        %v265 = vadd.f32 %v263, %v264
        %v266 = vlog2.pop %v258
        %v267 = vmul.f32 %v266, 0.6931472
        %v268 = vlog2.pop %v265
        %v269 = vmul.f32 %v268, 0.6931472
        %v270 = vlaneseq
        %v271 = vshrl.u32 %v270, 7
        %v272 = vlaneseq
        %v273 = vshrl.u32 %v272, 7
        %v274 = vsub.s32 0, %v273
        %v275 = vrot.slane %v223, %v274
        %v276 = vlaneseq
        %v277 = vshrl.u32 %v276, 7
        %v278 = vsub.s32 1, %v277
        %v279 = vrot.slane %v223, %v278
        %vm280 = vcmp.eq.s32.totalorder %v271, %v275
        %vm281 = vcmp.eq.s32.totalorder %v271, %v279
        %v283 = vcombine.high %v246, %v246
        %v285 = vsel %vm280, %v246, 0.0
        %v286 = vsel %vm281, %v283, 0.0
        %v287 = vsel %vm227, %v285, 0.0
        %v288 = vrot.slane %v287, 4
        %v289 = vadd.f32 %v287, %v288
        %v290 = vrot.slane %v289, 2
        %v291 = vadd.f32 %v289, %v290
        %v292 = vrot.slane %v291, 1
        %v293 = vadd.f32 %v291, %v292
        %v294 = vsel %vm227, %v286, 0.0
        %v295 = vrot.slane %v294, 4
        %v296 = vadd.f32 %v294, %v295
        %v297 = vrot.slane %v296, 2
        %v298 = vadd.f32 %v296, %v297
        %v299 = vrot.slane %v298, 1
        %v300 = vadd.f32 %v298, %v299
        %v301 = vsub.f32 %v293, %v267
        %v302 = vsub.f32 %v300, %v269
        %v303 = vmax.f32 %v301, -23.02585
        %v304 = vmax.f32 %v302, -23.02585
        %v305 = vmul.f32 %v303, 1.442695
        %v306 = vpow.pop %v305
        %v307 = vmul.f32 %v304, 1.442695
        %v308 = vpow.pop %v307
        %v309 = vsub.f32 1.0, %v306
        %v310 = vsub.f32 1.0, %v308
        %v311 = vmul.f32 %v309, %v309
        %v312 = vmul.f32 %v310, %v310
        %v313 = vsub.f32 0.0, %v311
        %v314 = vsub.f32 0.0, %v312
        %v315 = vmul.f32 %v313, %v303
        %v316 = vmul.f32 %v314, %v304
        %v317 = vmul.f32 %v306, %v303
        %v318 = vmul.f32 %v308, %v304
        %v319 = vsub.f32 0.0, %v317
        %v320 = vsub.f32 0.0, %v318
        %s321 = smul.u32 %s27, 256
        %v322 = vlaneseq
        %v323 = vand.u32 %v322, 127
        %v324 = vadd.s32 %v323, 128
        %v325 = vstv %s321
        %v326 = vadd.s32 %v325, %v323
        %v327 = vadd.s32 %v325, %v324
        %vm328 = vcmp.lt.s32.totalorder %v326, 256
        %vm329 = vcmp.lt.s32.totalorder %v327, 256
        %v330 = vsel %vm328, %v315, 0.0
        %v331 = vsel %vm329, %v316, 0.0
        %vm332 = vcmask 1040384
        %v333 = vsel %vm332, %v330, 0.0
        %v334 = vsel %vm332, %v331, 0.0
        %v335 = vadd.f32 %v333, %v334
        %336 = vadd.xlane.f32.xlu0 %v335
        %v337 = vpop.xlane.xlu0 %336
        %v338 = vrot.slane %v337, 4
        %v339 = vadd.f32 %v337, %v338
        %v340 = vrot.slane %v339, 2
        %v341 = vadd.f32 %v339, %v340
        %v342 = vrot.slane %v341, 1
        %v343 = vadd.f32 %v341, %v342
        %s344 = vtos %v343
        %v345 = vsel %vm328, %v319, 0.0
        %v346 = vsel %vm329, %v320, 0.0
        %v347 = vsel %vm332, %v345, 0.0
        %v348 = vsel %vm332, %v346, 0.0
        %v349 = vadd.f32 %v347, %v348
        %350 = vadd.xlane.f32.xlu0 %v349
        %v351 = vpop.xlane.xlu0 %350
        %v352 = vrot.slane %v351, 4
        %v353 = vadd.f32 %v351, %v352
        %v354 = vrot.slane %v353, 2
        %v355 = vadd.f32 %v353, %v354
        %v356 = vrot.slane %v355, 1
        %v357 = vadd.f32 %v355, %v356
        %s358 = vtos %v357
        %vm359 = vcmp.lt.s32.totalorder %v271, 4
        %v360 = vstv %s344
        %v361 = vstv %s358
        %v362 = vsel %vm359, %v360, %v361
        %363 = vst [vmem:[%s219] sm:$0xff] %v362
        %s364 = sand.u32 %s100, 1
        %s365 = scalar_lea.sflag [#allocation4], %s364
        %s366 = sand.u32 %s100, 1
        %s367 = smul.addr %s366, 8
        %s368 = scalar_lea.vmem [#allocation7], %s367
        // Predicated region
        $region37: #{tpu_custom_call.1} parent=27 // pred_check
          %p369 = pneg %p110
        $region38: #{tpu_custom_call.1} parent=27 // pred_check_branch
          %371 = sbr.rel (%p369) target = $region40
        $region39: #{tpu_custom_call.1} parent=27 // pred_region
          %s373 = ssub.s32 128, 128
          %374 = vsyncadd %s365, %s373
          %s375 = sadd.s32 %s27, %s26
          %s376 = smul.addr %s375, 128
          %s377 = scalar_lea.hbm %s2, %s376
          %s379 = sshll.u32 %s368, 4
          %s380 = int_to_ptr.vmem [resolvable:$true] %s379
          %382 = dma.vmem_to_hbm [thread:$0]  %s380, 128, %s377, %s365
        $region40: #{tpu_custom_call.1} parent=27 // pred_fallthru
          _
      $region28: #{tpu_custom_call.1} parent=5 // pred_fallthru
        _
      %p383 = scmp.le.s32.totalorder 2, %s17
      // Predicated region
      $region41: #{tpu_custom_call.1} parent=5 // pred_check
        %p384 = pneg %p383
      $region42: #{tpu_custom_call.1} parent=5 // pred_check_branch
        %386 = sbr.rel (%p384) target = $region44
      $region43: #{tpu_custom_call.1} parent=5 // pred_region
        %s387 = ssub.s32 %s17, 2
        // Predicated region
        $region45: #{tpu_custom_call.1} parent=43 // pred_check
          %p388 = pneg %p116
        $region46: #{tpu_custom_call.1} parent=43 // pred_check_branch
          %390 = sbr.rel (%p388) target = $region48
        $region47: #{tpu_custom_call.1} parent=43 // pred_region
          %s391 = sand.u32 %s101, 1
          %s392 = scalar_lea.sflag [#allocation4], %s391
          %s393 = sand.u32 %s101, 1
          %s394 = smul.addr %s393, 8
          %s395 = scalar_lea.vmem [#allocation7], %s394
          %396 = dma.done %s392, 128
        $region48: #{tpu_custom_call.1} parent=43 // pred_fallthru
          _
      $region44: #{tpu_custom_call.1} parent=5 // pred_fallthru
        _
    $region6: #{tpu_custom_call.1} parent=1 // loop_footer
      %s21 = sadd.s32 1, %s17
    $region7: #{tpu_custom_call.1} parent=1 // loop_footer_branch
      %16 = sbr.rel target = $region3
    $region8: #{tpu_custom_call.1} parent=1 // loop_exit
      _
    %397 = vsyncpa [#allocation3], 1
    %s398 = scalar_lea.sflag [#allocation3], 1
    %399 = vsyncpa %s398, 1
    %400 = vsyncpa [#allocation6], 1
    %s401 = scalar_lea.sflag [#allocation6], 1
    %402 = vsyncpa %s401, 1
    %403 = vsyncpa [#allocation4], 1
    %s404 = scalar_lea.sflag [#allocation4], 1
    %405 = vsyncpa %s404, 1

</llo_original>
